<compile_context>
chip_gen: v7x
topology: tpu7x:2x2x1
jax: 0.10.0
libtpu: 0.0.40
codegen_flags: <defaults>
</compile_context>

<pallas_src>
import jax
import jax.numpy as jnp
from jax.experimental import pallas as pl
from jax.experimental.pallas import tpu as pltpu


# ----------------------------- Pallas kernel --------------------------------

def _linear_relu_kernel(x_ref, w_ref, b_ref, o_ref):
    # x: (B, K) f32, w: (K, tn) f32, b: (1, tn) f32 -> relu(x @ w + b) f32
    acc = jnp.dot(x_ref[...], w_ref[...], preferred_element_type=jnp.float32)
    o_ref[...] = jnp.maximum(acc + b_ref[...], 0.0)


def linear_relu(x, w, b, tn=512):
    """x: (B, K) f32, w: (K, N) f32, b: (N,) f32 -> relu(x @ w + b) (B, N) f32."""
    B, K = x.shape
    N = w.shape[1]
    b2 = b.reshape(1, N)

    if N <= tn:
        # Single launch: all operands resident in VMEM (weight is 22.5 KiB).
        return pl.pallas_call(
            _linear_relu_kernel,
            out_shape=jax.ShapeDtypeStruct((B, N), jnp.float32),
            in_specs=[pl.BlockSpec(memory_space=pltpu.MemorySpace.VMEM)] * 3,
            out_specs=pl.BlockSpec(memory_space=pltpu.MemorySpace.VMEM),
        )(x, w, b2)

    # Fallback for large N: tile over the output (lane) dim so the weight
    # streams through VMEM double-buffered; axis is 'parallel' for megacore.
    return pl.pallas_call(
        _linear_relu_kernel,
        out_shape=jax.ShapeDtypeStruct((B, N), jnp.float32),
        grid=(pl.cdiv(N, tn),),
        in_specs=[
            pl.BlockSpec((B, K), lambda j: (0, 0)),
            pl.BlockSpec((K, tn), lambda j: (0, j)),
            pl.BlockSpec((1, tn), lambda j: (0, j)),
        ],
        out_specs=pl.BlockSpec((B, tn), lambda j: (0, j)),
        compiler_params=pltpu.CompilerParams(
            dimension_semantics=("parallel",)),
    )(x, w, b2)


# ------------------------------ Model glue -----------------------------------

def init_params(key):
    """Mirror torch.nn.Linear(11, 512) default init (U(-1/sqrt(fin), +))."""
    kw, kb = jax.random.split(key, 2)
    fin, fout = 11, 512
    lim = 1.0 / (fin ** 0.5)
    w = jax.random.uniform(kw, (fin, fout), jnp.float32, -lim, lim)
    b = jax.random.uniform(kb, (fout,), jnp.float32, -lim, lim)
    return {"layer1": (w, b)}


def net_forward(params, x):
    """x: (B, 11) f32 -> relu(x @ W + b): (B, 512) f32."""
    w, b = params["layer1"]
    return linear_relu(x, w, b)


if __name__ == "__main__":
    key = jax.random.PRNGKey(0)
    pkey, xkey = jax.random.split(key, 2)
    params = init_params(pkey)

    B = 2
    x = jax.random.normal(xkey, (B, 11), jnp.float32)

    out = jax.jit(net_forward)(params, x)
    out = jax.block_until_ready(out)

    # Pure-JAX f32 reference (per review: tolerance check, not just isfinite).
    w, b = params["layer1"]
    ref = jnp.maximum(x @ w + b, 0.0)

    assert out.shape == (B, 512), out.shape
    assert jnp.all(jnp.isfinite(out))
    assert jnp.allclose(out, ref, atol=1e-5, rtol=1e-5), float(
        jnp.max(jnp.abs(out - ref)))
    print("KERNEL_OK")
</pallas_src>

<mosaic_0001>
module attributes {stable_mosaic.version = 11 : i64} {
  func.func @_linear_relu_kernel(%arg0: memref<2x11xf32, #tpu.memory_space<vmem>>, %arg1: memref<11x512xf32, #tpu.memory_space<vmem>>, %arg2: memref<1x512xf32, #tpu.memory_space<vmem>>, %arg3: memref<2x512xf32, #tpu.memory_space<vmem>>) attributes {dimension_semantics = [], scalar_prefetch = 0 : i64, scratch_operands = 0 : i64, tpu.core_type = #tpu.core_type<tc>} {
    %c0 = arith.constant 0 : index
    %c0_0 = arith.constant 0 : index
    %0 = vector.load %arg0[%c0, %c0_0] : memref<2x11xf32, #tpu.memory_space<vmem>>, vector<2x11xf32>
    %c0_1 = arith.constant 0 : index
    %c0_2 = arith.constant 0 : index
    %1 = vector.load %arg1[%c0_1, %c0_2] : memref<11x512xf32, #tpu.memory_space<vmem>>, vector<11x512xf32>
    %cst = arith.constant dense<0.000000e+00> : vector<2x512xf32>
    %2 = tpu.matmul %0, %1, %cst {dimension_numbers = #tpu.dot_dimension_numbers<[1], [0], [0], [1], [0, 0, 1, 1], [], []>} : vector<2x11xf32>, vector<11x512xf32>, vector<2x512xf32> -> vector<2x512xf32>
    %c0_3 = arith.constant 0 : index
    %c0_4 = arith.constant 0 : index
    %3 = vector.load %arg2[%c0_3, %c0_4] : memref<1x512xf32, #tpu.memory_space<vmem>>, vector<1x512xf32>
    %4 = vector.broadcast %3 : vector<1x512xf32> to vector<2x512xf32>
    %5 = arith.addf %2, %4 : vector<2x512xf32>
    %cst_5 = arith.constant 0.000000e+00 : f32
    %6 = vector.broadcast %cst_5 : f32 to vector<2x512xf32>
    %7 = arith.maximumf %5, %6 : vector<2x512xf32>
    %c0_6 = arith.constant 0 : index
    %c0_7 = arith.constant 0 : index
    %8 = vector.load %arg3[%c0_6, %c0_7] : memref<2x512xf32, #tpu.memory_space<vmem>>, vector<2x512xf32>
    tpu.vector_store %arg3[%c0_6, %c0_7], %7 {strides = array<i32>} : memref<2x512xf32, #tpu.memory_space<vmem>>, vector<2x512xf32>,
    return
  }
}

</mosaic_0001>

<llo_original>
// kernel: net_forward.1
$region0: #{net_forward.1}
  #allocation0 [shape = 'u32[]', space=smem, size = 0x4, offset = 0x4, fixed_abs, tag = 'smem constant byte address 0x4 - core index']
  #allocation1 [shape = 'u32[144,128]{1,0:T(1,128)}', space=vmem, size = 0x12000, scoped, tag = 'internal scratch']
  %s0 = inlined_call_operand.vmem [shape: f32[2,11], index: 0, kind: input, shape index: {}]
  %s1 = inlined_call_operand.hbm [shape: f32[11,512], index: 1, kind: input, shape index: {}]
  %s2 = inlined_call_operand.vmem [shape: f32[1,512], index: 2, kind: input, shape index: {}]
  %s3 = inlined_call_operand.hbm [shape: f32[2,512], index: 3, kind: output, shape index: {}]
  %s4 = sld [smem:[#allocation0]]
  $region26: #{net_forward.1} parent=0
    _
  %s6 = ssub.s32 1, %s4
  %s7 = scalar_select 0, %s6, %s4
  $region1: #{net_forward.1} parent=0
    #allocation2 [shape = 'u8[32768]{0}', space=vmem, size = 0x8000, scoped, tag = 'input window, operand 1, single buffered']
    #allocation3 [shape = 's32[1]{0}', space=sflag, size = 0x4, scoped, tag = 'scoped memory for net_forward.1']
    #allocation4 [shape = 's32[1]{0}', space=sflag, size = 0x4, scoped, tag = 'scoped memory for net_forward.1']
    #allocation5 [shape = 'u8[4096]{0}', space=vmem, size = 0x1000, scoped, tag = 'output window, operand 0, single buffered']
    %8 = vsyncpa [#allocation3], 0
    %9 = vsyncpa [#allocation4], 0
    // Predicated region
    $region2: #{net_forward.1} parent=1 // pred_check
      _
    $region3: #{net_forward.1} parent=1 // pred_check_branch
      %11 = sbr.rel (0) target = $region5
    $region4: #{net_forward.1} parent=1 // pred_region
      _
    $region5: #{net_forward.1} parent=1 // pred_fallthru
      _
    // Predicated region
    $region6: #{net_forward.1} parent=1 // pred_check
      _
    $region7: #{net_forward.1} parent=1 // pred_check_branch
      %13 = sbr.rel (0) target = $region9
    $region8: #{net_forward.1} parent=1 // pred_region
      %s15 = ssub.s32 1024, 1024
      %16 = vsyncadd [#allocation3], %s15
      %s17 = sshll.u32 [#allocation2], 4
      %s18 = int_to_ptr.vmem [resolvable:$true] %s17
      %23 = dma.hbm_to_vmem [thread:$0]  %s1, 1024, %s18, [#allocation3], 512, 512, 32
    $region9: #{net_forward.1} parent=1 // pred_fallthru
      _
    // Predicated region
    $region10: #{net_forward.1} parent=1 // pred_check
      _
    $region11: #{net_forward.1} parent=1 // pred_check_branch
      %25 = sbr.rel (0) target = $region13
    $region12: #{net_forward.1} parent=1 // pred_region
      _
    $region13: #{net_forward.1} parent=1 // pred_fallthru
      _
    // Predicated region
    $region14: #{net_forward.1} parent=1 // pred_check
      _
    $region15: #{net_forward.1} parent=1 // pred_check_branch
      %27 = sbr.rel (0) target = $region17
    $region16: #{net_forward.1} parent=1 // pred_region
      %28 = dma.done [#allocation3], 1024
    $region17: #{net_forward.1} parent=1 // pred_fallthru
      _
    %v29 = vld [vmem:[%s0] sm:$0x3]
    %v30 = vld [vmem:[#allocation2] sm:$0xff]
    %v31 = vld [vmem:[#allocation2 + $0x8] sm:$0xff]
    %v32 = vld [vmem:[#allocation2 + $0x10] sm:$0xff]
    %v33 = vld [vmem:[#allocation2 + $0x18] sm:$0xff]
    %v34 = vld [vmem:[#allocation2 + $0x20] sm:$0x7]
    %v35 = vld [vmem:[#allocation2 + $0x28] sm:$0x7]
    %v36 = vld [vmem:[#allocation2 + $0x30] sm:$0x7]
    %v37 = vld [vmem:[#allocation2 + $0x38] sm:$0x7]
    %v38 = vld [vmem:[%s2] sm:$0xf]
    %v40 = vlaneseq
    %v41 = vshrl.u32 %v40, 7
    %v42 = vsub.s32 0, %v41
    %v43 = vrot.slane %v38, %v42
    %v44 = vlaneseq
    %v45 = vshrl.u32 %v44, 7
    %v46 = vsub.s32 1, %v45
    %v47 = vrot.slane %v38, %v46
    %v48 = vlaneseq
    %v49 = vshrl.u32 %v48, 7
    %v50 = vsub.s32 2, %v49
    %v51 = vrot.slane %v38, %v50
    %v52 = vlaneseq
    %v53 = vshrl.u32 %v52, 7
    %v54 = vsub.s32 3, %v53
    %v55 = vrot.slane %v38, %v54
    %vm60 = vcmask 89088
    %v62 = vsel %vm60, %v29, 0
    %vm64 = vcmask 1042432
    %v66 = vsel %vm64, %v34, 0
    %v69 = vsel %vm64, %v35, 0
    %v72 = vsel %vm64, %v36, 0
    %v75 = vsel %vm64, %v37, 0
    %77 = vmatprep.subr.mxu0 %v31
    %78 = vmatpush1.msra.mxu0 %v30
    %79 = vmatprep.subr.mxu0 %v69
    %80 = vmatpush1.msra.mxu0 %v66
    %81 = vmatprep.subr.mxu0 0.0
    %82 = vmatpush1.msra.mxu0 0.0
    %83 = vmatprep.subr.mxu0 0.0
    %84 = vmatpush1.msra.mxu0 0.0
    %85 = vmatprep.subr.mxu0 0.0
    %86 = vmatpush1.msra.mxu0 0.0
    %87 = vmatprep.subr.mxu0 0.0
    %88 = vmatpush1.msra.mxu0 0.0
    %89 = vmatprep.subr.mxu0 0.0
    %90 = vmatpush1.msra.mxu0 0.0
    %91 = vmatprep.subr.mxu0 0.0
    %92 = vmatpush1.msra.mxu0 0.0
    %93 = vmatprep.subr.mxu0 0.0
    %94 = vmatpush1.msra.mxu0 0.0
    %95 = vmatprep.subr.mxu0 0.0
    %96 = vmatpush1.msra.mxu0 0.0
    %97 = vmatprep.subr.mxu0 0.0
    %98 = vmatpush1.msra.mxu0 0.0
    %99 = vmatprep.subr.mxu0 0.0
    %100 = vmatpush1.msra.mxu0 0.0
    %101 = vmatprep.subr.mxu0 0.0
    %102 = vmatpush1.msra.mxu0 0.0
    %103 = vmatprep.subr.mxu0 0.0
    %104 = vmatpush1.msra.mxu0 0.0
    %105 = vmatprep.subr.mxu0 0.0
    %106 = vmatpush1.msra.mxu0 0.0
    %107 = vmatprep.subr.mxu0 0.0
    %108 = vmatpush1.msra.mxu0 0.0
    %109 = vmatprep.subr.mxu0 0.0
    %110 = vmatpush1.msra.mxu0 0.0
    %111 = vmatprep.subr.mxu0 0.0
    %112 = vmatpush1.msra.mxu0 0.0
    %113 = vmatprep.subr.mxu0 0.0
    %114 = vmatpush1.msra.mxu0 0.0
    %115 = vmatprep.subr.mxu0 0.0
    %116 = vmatpush1.msra.mxu0 0.0
    %117 = vmatprep.subr.mxu0 0.0
    %118 = vmatpush1.msra.mxu0 0.0
    %119 = vmatprep.subr.mxu0 0.0
    %120 = vmatpush1.msra.mxu0 0.0
    %121 = vmatprep.subr.mxu0 0.0
    %122 = vmatpush1.msra.mxu0 0.0
    %123 = vmatprep.subr.mxu0 0.0
    %124 = vmatpush1.msra.mxu0 0.0
    %125 = vmatprep.subr.mxu0 0.0
    %126 = vmatpush1.msra.mxu0 0.0
    %127 = vmatprep.subr.mxu0 0.0
    %128 = vmatpush1.msra.mxu0 0.0
    %129 = vmatprep.subr.mxu0 0.0
    %130 = vmatpush1.msra.mxu0 0.0
    %131 = vmatprep.subr.mxu0 0.0
    %132 = vmatpush1.msra.mxu0 0.0
    %133 = vmatprep.subr.mxu0 0.0
    %134 = vmatpush1.msra.mxu0 0.0
    %135 = vmatprep.subr.mxu0 0.0
    %136 = vmatpush1.msra.mxu0 0.0
    %137 = vmatprep.subr.mxu0 0.0
    %138 = vmatpush1.msra.mxu0 0.0
    %139 = vmatprep.subr.mxu0 0.0
    %140 = vmatpush1.msra.mxu0 0.0
    %141 = vmatprep.mubr.f32.mxu0 0.0
    %142 = vmatmul.mubr.f32.gmra.mrb[0].mxu0 %v62
    %v143 = vpop.f32.mrb[0].mxu0
    %v144 = vadd.f32 %v43, %v143
    %v145 = vpop.f32.mrb[0].mxu0
    %v146 = vadd.f32 %v47, %v145
    %147 = vdwg.mxu0
    %148 = vmatprep.subr.mxu0 %v33
    %149 = vmatpush1.msra.mxu0 %v32
    %150 = vmatprep.subr.mxu0 %v75
    %151 = vmatpush1.msra.mxu0 %v72
    %152 = vmatprep.subr.mxu0 0.0
    %153 = vmatpush1.msra.mxu0 0.0
    %154 = vmatprep.subr.mxu0 0.0
    %155 = vmatpush1.msra.mxu0 0.0
    %156 = vmatprep.subr.mxu0 0.0
    %157 = vmatpush1.msra.mxu0 0.0
    %158 = vmatprep.subr.mxu0 0.0
    %159 = vmatpush1.msra.mxu0 0.0
    %160 = vmatprep.subr.mxu0 0.0
    %161 = vmatpush1.msra.mxu0 0.0
    %162 = vmatprep.subr.mxu0 0.0
    %163 = vmatpush1.msra.mxu0 0.0
    %164 = vmatprep.subr.mxu0 0.0
    %165 = vmatpush1.msra.mxu0 0.0
    %166 = vmatprep.subr.mxu0 0.0
    %167 = vmatpush1.msra.mxu0 0.0
    %168 = vmatprep.subr.mxu0 0.0
    %169 = vmatpush1.msra.mxu0 0.0
    %170 = vmatprep.subr.mxu0 0.0
    %171 = vmatpush1.msra.mxu0 0.0
    %172 = vmatprep.subr.mxu0 0.0
    %173 = vmatpush1.msra.mxu0 0.0
    %174 = vmatprep.subr.mxu0 0.0
    %175 = vmatpush1.msra.mxu0 0.0
    %176 = vmatprep.subr.mxu0 0.0
    %177 = vmatpush1.msra.mxu0 0.0
    %178 = vmatprep.subr.mxu0 0.0
    %179 = vmatpush1.msra.mxu0 0.0
    %180 = vmatprep.subr.mxu0 0.0
    %181 = vmatpush1.msra.mxu0 0.0
    %182 = vmatprep.subr.mxu0 0.0
    %183 = vmatpush1.msra.mxu0 0.0
    %184 = vmatprep.subr.mxu0 0.0
    %185 = vmatpush1.msra.mxu0 0.0
    %186 = vmatprep.subr.mxu0 0.0
    %187 = vmatpush1.msra.mxu0 0.0
    %188 = vmatprep.subr.mxu0 0.0
    %189 = vmatpush1.msra.mxu0 0.0
    %190 = vmatprep.subr.mxu0 0.0
    %191 = vmatpush1.msra.mxu0 0.0
    %192 = vmatprep.subr.mxu0 0.0
    %193 = vmatpush1.msra.mxu0 0.0
    %194 = vmatprep.subr.mxu0 0.0
    %195 = vmatpush1.msra.mxu0 0.0
    %196 = vmatprep.subr.mxu0 0.0
    %197 = vmatpush1.msra.mxu0 0.0
    %198 = vmatprep.subr.mxu0 0.0
    %199 = vmatpush1.msra.mxu0 0.0
    %200 = vmatprep.subr.mxu0 0.0
    %201 = vmatpush1.msra.mxu0 0.0
    %202 = vmatprep.subr.mxu0 0.0
    %203 = vmatpush1.msra.mxu0 0.0
    %204 = vmatprep.subr.mxu0 0.0
    %205 = vmatpush1.msra.mxu0 0.0
    %206 = vmatprep.subr.mxu0 0.0
    %207 = vmatpush1.msra.mxu0 0.0
    %208 = vmatprep.subr.mxu0 0.0
    %209 = vmatpush1.msra.mxu0 0.0
    %210 = vmatprep.subr.mxu0 0.0
    %211 = vmatpush1.msra.mxu0 0.0
    %212 = vmatprep.mubr.f32.mxu0 0.0
    %213 = vmatmul.mubr.f32.gmra.mrb[0].mxu0 %v62
    %v214 = vpop.f32.mrb[0].mxu0
    %v215 = vadd.f32 %v51, %v214
    %v216 = vpop.f32.mrb[0].mxu0
    %v217 = vadd.f32 %v55, %v216
    %218 = vdwg.mxu0
    %v219 = vmax.f32 %v144, 0.0
    %v220 = vmax.f32 %v146, 0.0
    %v221 = vmax.f32 %v215, 0.0
    %v222 = vmax.f32 %v217, 0.0
    %v227 = vcombine.low %v219, %v220
    %v228 = vcombine.low %v221, %v222
    %v230 = vunpack.c.l.s4 1983009808
    %v231 = vunpack.c.0.s8 %v230
    %v232 = vlaneseq
    %v233 = vshrl.u32 %v232, 7
    %v234 = vsub.s32 %v231, %v233
    %v235 = vrot.slane %v227, %v234
    %v237 = vunpack.c.l.s4 1983009808
    %v238 = vunpack.c.0.s8 %v237
    %v239 = vlaneseq
    %v240 = vshrl.u32 %v239, 7
    %v241 = vsub.s32 %v238, %v240
    %v242 = vrot.slane %v228, %v241
    %v243 = vcombine.low %v235, %v242
    %245 = vst [vmem:[#allocation5] sm:$0xff] %v243
    // Predicated region
    $region18: #{net_forward.1} parent=1 // pred_check
      _
    $region19: #{net_forward.1} parent=1 // pred_check_branch
      %247 = sbr.rel (0) target = $region21
    $region20: #{net_forward.1} parent=1 // pred_region
      %s249 = ssub.s32 128, 128
      %250 = vsyncadd [#allocation4], %s249
      %s252 = sshll.u32 [#allocation5], 4
      %s253 = int_to_ptr.vmem [resolvable:$true] %s252
      %255 = dma.vmem_to_hbm [thread:$0]  %s253, 128, %s3, [#allocation4]
    $region21: #{net_forward.1} parent=1 // pred_fallthru
      _
    // Predicated region
    $region22: #{net_forward.1} parent=1 // pred_check
      _
    $region23: #{net_forward.1} parent=1 // pred_check_branch
      %257 = sbr.rel (0) target = $region25
    $region24: #{net_forward.1} parent=1 // pred_region
      %258 = dma.done [#allocation4], 128
    $region25: #{net_forward.1} parent=1 // pred_fallthru
      _
    %259 = vsyncpa [#allocation3], 1
    %260 = vsyncpa [#allocation4], 1

</llo_original>
